<compile_context>
chip_gen: v6e
topology: v6e:2x2x1
jax: 0.10.0
libtpu: 0.0.40
codegen_flags: <defaults>
</compile_context>

<pallas_src>
import functools

import jax
import jax.numpy as jnp
from jax.experimental import pallas as pl
from jax.experimental.pallas import tpu as pltpu


def _fuse_kernel(x1_ref, x2_ref, w1_ref, w2_ref, o_ref, acc_ref):
    # x1_ref, x2_ref : (tm, tk)   row/contraction tile of each input
    # w1_ref, w2_ref : (tk, tn)   pre-transposed weight tiles (W^T halves)
    # o_ref          : (tm, tn)
    # acc_ref        : (tm, tn)   f32 accumulator, resident across the k axis
    k = pl.program_id(2)

    @pl.when(k == 0)
    def _():
        acc_ref[...] = jnp.zeros_like(acc_ref)

    acc_ref[...] += jnp.dot(x1_ref[...], w1_ref[...],
                            preferred_element_type=jnp.float32)
    acc_ref[...] += jnp.dot(x2_ref[...], w2_ref[...],
                            preferred_element_type=jnp.float32)

    @pl.when(k == pl.num_programs(2) - 1)
    def _():
        o_ref[...] = acc_ref[...].astype(o_ref.dtype)


def prepare_weights(weight):
    """Split/transpose the PyTorch [H, 2H] weight ONCE, outside the per-call path.

    Returns (w1_t, w2_t), each [H_in, H_out], so the kernel computes
    x1 @ w1_t + x2 @ w2_t == cat(x1, x2) @ weight.T.
    """
    H = weight.shape[0]
    assert weight.shape == (H, 2 * H)
    w1_t = jnp.asarray(weight[:, :H].T)
    w2_t = jnp.asarray(weight[:, H:].T)
    return w1_t, w2_t


def _round_up(x, m):
    return (x + m - 1) // m * m


def _pick_feature_tile(H, want):
    """Tile for a feature (lane) axis: `want` if it divides cleanly, else full H."""
    if H > want and H % want == 0 and want % 128 == 0:
        return want
    return H  # full-dim block is always layout-legal


@functools.partial(jax.jit, static_argnames=("tm", "tn", "tk"))
def fuse_layer(input1, input2, w1_t, w2_t, *, tm=512, tn=512, tk=512):
    """input1, input2: [B, S, H]; w1_t, w2_t: [H, H] (from prepare_weights)."""
    B, S, H = input1.shape
    assert input2.shape == (B, S, H)
    assert w1_t.shape == (H, H) and w2_t.shape == (H, H)
    M = B * S

    x1 = input1.reshape(M, H)
    x2 = input2.reshape(M, H)

    # Row tile: clamp to the (sublane-rounded) row count, then pad ragged M so
    # no rows are silently dropped and every MXU pass is full.
    tm_eff = min(tm, _round_up(M, 8))
    Mp = _round_up(M, tm_eff)
    if Mp != M:
        x1 = jnp.pad(x1, ((0, Mp - M), (0, 0)))
        x2 = jnp.pad(x2, ((0, Mp - M), (0, 0)))

    tn_eff = _pick_feature_tile(H, tn)  # output-feature tile
    tk_eff = _pick_feature_tile(H, tk)  # contraction tile

    grid = (Mp // tm_eff, H // tn_eff, H // tk_eff)

    # Size scoped VMEM from the actual tile footprint (double-buffered inputs/
    # weights/output + f32 accumulator), with 2x headroom, capped for v7x's
    # 64 MiB physical VMEM.
    in_b = jnp.dtype(x1.dtype).itemsize
    w_b = jnp.dtype(w1_t.dtype).itemsize
    out_b = in_b
    tile_bytes = (2 * (2 * tm_eff * tk_eff * in_b
                       + 2 * tk_eff * tn_eff * w_b
                       + tm_eff * tn_eff * out_b)
                  + tm_eff * tn_eff * 4)
    vmem_limit = int(min(max(2 * tile_bytes, 16 * 1024 * 1024),
                         64 * 1024 * 1024))

    # NOTE: when H is small enough that the weight blocks are constant across
    # the grid, pipeline_mode=pl.Buffered(1) on the weight specs would halve
    # their VMEM; kept default-buffered here for portability.
    out = pl.pallas_call(
        _fuse_kernel,
        out_shape=jax.ShapeDtypeStruct((Mp, H), input1.dtype),
        grid_spec=pltpu.PrefetchScalarGridSpec(
            num_scalar_prefetch=0,
            grid=grid,
            in_specs=[
                pl.BlockSpec((tm_eff, tk_eff), lambda i, j, k: (i, k)),
                pl.BlockSpec((tm_eff, tk_eff), lambda i, j, k: (i, k)),
                pl.BlockSpec((tk_eff, tn_eff), lambda i, j, k: (k, j)),
                pl.BlockSpec((tk_eff, tn_eff), lambda i, j, k: (k, j)),
            ],
            out_specs=pl.BlockSpec((tm_eff, tn_eff), lambda i, j, k: (i, j)),
            scratch_shapes=[pltpu.VMEM((tm_eff, tn_eff), jnp.float32)],
        ),
        compiler_params=pltpu.CompilerParams(
            dimension_semantics=("parallel", "parallel", "arbitrary"),
            vmem_limit_bytes=vmem_limit,
        ),
    )(x1, x2, w1_t, w2_t)

    if Mp != M:
        out = out[:M]
    return out.reshape(B, S, H)


def _xavier_uniform(key, shape, dtype=jnp.float32):
    # xavier_uniform_ for a [fan_out, fan_in] Linear weight.
    fan_out, fan_in = shape
    limit = (6.0 / (fan_in + fan_out)) ** 0.5
    return jax.random.uniform(key, shape, dtype, minval=-limit, maxval=limit)


if __name__ == "__main__":
    B, S, H = 2, 8, 32

    key = jax.random.PRNGKey(0)
    k1, k2, kw = jax.random.split(key, 3)

    input1 = jax.random.normal(k1, (B, S, H), jnp.float32)
    input2 = jax.random.normal(k2, (B, S, H), jnp.float32)
    # nn.Linear(2H, H, bias=False) weight has shape [H, 2H].
    weight = _xavier_uniform(kw, (H, 2 * H))

    # One-time weight prep (outside the per-call path).
    w1_t, w2_t = prepare_weights(weight)

    out = fuse_layer(input1, input2, w1_t, w2_t)
    out = jax.block_until_ready(out)

    # Reference check against plain JAX (cat + matmul).
    ref = jnp.concatenate([input1, input2], axis=-1) @ weight.T
    assert out.shape == (B, S, H)
    assert jnp.allclose(out, ref, atol=1e-5, rtol=1e-5)

    # Ragged-M path (B*S not a multiple of the row tile): exercises padding.
    B2, S2 = 3, 5
    k3, k4 = jax.random.split(k1)
    a = jax.random.normal(k3, (B2, S2, H), jnp.float32)
    b = jax.random.normal(k4, (B2, S2, H), jnp.float32)
    out2 = jax.block_until_ready(fuse_layer(a, b, w1_t, w2_t))
    ref2 = jnp.concatenate([a, b], axis=-1) @ weight.T
    assert out2.shape == (B2, S2, H)
    assert jnp.allclose(out2, ref2, atol=1e-5, rtol=1e-5)

    print("KERNEL_OK")
</pallas_src>

<mosaic_0001>
module attributes {stable_mosaic.version = 11 : i64} {
  func.func @_fuse_kernel(%arg0: i32, %arg1: i32, %arg2: i32, %arg3: memref<16x32xf32, #tpu.memory_space<vmem>>, %arg4: memref<16x32xf32, #tpu.memory_space<vmem>>, %arg5: memref<32x32xf32, #tpu.memory_space<vmem>>, %arg6: memref<32x32xf32, #tpu.memory_space<vmem>>, %arg7: memref<16x32xf32, #tpu.memory_space<vmem>>, %arg8: memref<16x32xf32, #tpu.memory_space<vmem>>) attributes {dimension_semantics = [#tpu.dimension_semantics<parallel>, #tpu.dimension_semantics<parallel>, #tpu.dimension_semantics<arbitrary>], iteration_bounds = array<i64: 1, 1, 1>, scalar_prefetch = 0 : i64, scratch_operands = 1 : i64, tpu.core_type = #tpu.core_type<tc>, window_params = [{transform_indices = @transform_0, window_bounds = array<i64: 16, 32>}, {transform_indices = @transform_1, window_bounds = array<i64: 16, 32>}, {transform_indices = @transform_2, window_bounds = array<i64: 32, 32>}, {transform_indices = @transform_3, window_bounds = array<i64: 32, 32>}, {transform_indices = @transform_4, window_bounds = array<i64: 16, 32>}]} {
    %c0_i32 = arith.constant 0 : i32
    %0 = arith.cmpi eq, %arg2, %c0_i32 : i32
    %1 = arith.extui %0 : i1 to i32
    %c0_i32_0 = arith.constant 0 : i32
    %2 = arith.cmpi ne, %1, %c0_i32_0 : i32
    scf.if %2 {
      %cst_19 = arith.constant 0.000000e+00 : f32
      %18 = vector.broadcast %cst_19 : f32 to vector<16x32xf32>
      %c0_20 = arith.constant 0 : index
      %c0_21 = arith.constant 0 : index
      %19 = vector.load %arg8[%c0_20, %c0_21] : memref<16x32xf32, #tpu.memory_space<vmem>>, vector<16x32xf32>
      tpu.vector_store %arg8[%c0_20, %c0_21], %18 {strides = array<i32>} : memref<16x32xf32, #tpu.memory_space<vmem>>, vector<16x32xf32>,
    } else {
    }
    %c0 = arith.constant 0 : index
    %c0_1 = arith.constant 0 : index
    %3 = vector.load %arg8[%c0, %c0_1] : memref<16x32xf32, #tpu.memory_space<vmem>>, vector<16x32xf32>
    %c0_2 = arith.constant 0 : index
    %c0_3 = arith.constant 0 : index
    %4 = vector.load %arg3[%c0_2, %c0_3] : memref<16x32xf32, #tpu.memory_space<vmem>>, vector<16x32xf32>
    %c0_4 = arith.constant 0 : index
    %c0_5 = arith.constant 0 : index
    %5 = vector.load %arg5[%c0_4, %c0_5] : memref<32x32xf32, #tpu.memory_space<vmem>>, vector<32x32xf32>
    %cst = arith.constant dense<0.000000e+00> : vector<16x32xf32>
    %6 = tpu.matmul %4, %5, %cst {dimension_numbers = #tpu.dot_dimension_numbers<[1], [0], [0], [1], [0, 0, 1, 1], [], []>} : vector<16x32xf32>, vector<32x32xf32>, vector<16x32xf32> -> vector<16x32xf32>
    %7 = arith.addf %3, %6 : vector<16x32xf32>
    %c0_6 = arith.constant 0 : index
    %c0_7 = arith.constant 0 : index
    %8 = vector.load %arg8[%c0_6, %c0_7] : memref<16x32xf32, #tpu.memory_space<vmem>>, vector<16x32xf32>
    tpu.vector_store %arg8[%c0_6, %c0_7], %7 {strides = array<i32>} : memref<16x32xf32, #tpu.memory_space<vmem>>, vector<16x32xf32>,
    %c0_8 = arith.constant 0 : index
    %c0_9 = arith.constant 0 : index
    %9 = vector.load %arg8[%c0_8, %c0_9] : memref<16x32xf32, #tpu.memory_space<vmem>>, vector<16x32xf32>
    %c0_10 = arith.constant 0 : index
    %c0_11 = arith.constant 0 : index
    %10 = vector.load %arg4[%c0_10, %c0_11] : memref<16x32xf32, #tpu.memory_space<vmem>>, vector<16x32xf32>
    %c0_12 = arith.constant 0 : index
    %c0_13 = arith.constant 0 : index
    %11 = vector.load %arg6[%c0_12, %c0_13] : memref<32x32xf32, #tpu.memory_space<vmem>>, vector<32x32xf32>
    %cst_14 = arith.constant dense<0.000000e+00> : vector<16x32xf32>
    %12 = tpu.matmul %10, %11, %cst_14 {dimension_numbers = #tpu.dot_dimension_numbers<[1], [0], [0], [1], [0, 0, 1, 1], [], []>} : vector<16x32xf32>, vector<32x32xf32>, vector<16x32xf32> -> vector<16x32xf32>
    %13 = arith.addf %9, %12 : vector<16x32xf32>
    %c0_15 = arith.constant 0 : index
    %c0_16 = arith.constant 0 : index
    %14 = vector.load %arg8[%c0_15, %c0_16] : memref<16x32xf32, #tpu.memory_space<vmem>>, vector<16x32xf32>
    tpu.vector_store %arg8[%c0_15, %c0_16], %13 {strides = array<i32>} : memref<16x32xf32, #tpu.memory_space<vmem>>, vector<16x32xf32>,
    %c0_i32_17 = arith.constant 0 : i32
    %15 = arith.cmpi eq, %arg2, %c0_i32_17 : i32
    %16 = arith.extui %15 : i1 to i32
    %c0_i32_18 = arith.constant 0 : i32
    %17 = arith.cmpi ne, %16, %c0_i32_18 : i32
    scf.if %17 {
      %c0_19 = arith.constant 0 : index
      %c0_20 = arith.constant 0 : index
      %18 = vector.load %arg8[%c0_19, %c0_20] : memref<16x32xf32, #tpu.memory_space<vmem>>, vector<16x32xf32>
      %c0_21 = arith.constant 0 : index
      %c0_22 = arith.constant 0 : index
      %19 = vector.load %arg7[%c0_21, %c0_22] : memref<16x32xf32, #tpu.memory_space<vmem>>, vector<16x32xf32>
      tpu.vector_store %arg7[%c0_21, %c0_22], %18 {strides = array<i32>} : memref<16x32xf32, #tpu.memory_space<vmem>>, vector<16x32xf32>,
    } else {
    }
    return
  }
  func.func @transform_0(%arg0: i32, %arg1: i32, %arg2: i32) -> (i32, i32) {
    %c0_i32 = arith.constant 0 : i32
    return %arg0, %arg2 : i32, i32
  }
  func.func @transform_1(%arg0: i32, %arg1: i32, %arg2: i32) -> (i32, i32) {
    %c0_i32 = arith.constant 0 : i32
    return %arg0, %arg2 : i32, i32
  }
  func.func @transform_2(%arg0: i32, %arg1: i32, %arg2: i32) -> (i32, i32) {
    %c0_i32 = arith.constant 0 : i32
    return %arg2, %arg1 : i32, i32
  }
  func.func @transform_3(%arg0: i32, %arg1: i32, %arg2: i32) -> (i32, i32) {
    %c0_i32 = arith.constant 0 : i32
    return %arg2, %arg1 : i32, i32
  }
  func.func @transform_4(%arg0: i32, %arg1: i32, %arg2: i32) -> (i32, i32) {
    %c0_i32 = arith.constant 0 : i32
    return %arg0, %arg1 : i32, i32
  }
}

</mosaic_0001>

<llo_original>
// kernel: fuse_layer.1
$region0: #{fuse_layer.1}
  #allocation0 [shape = 'u32[]', space=smem, size = 0x4, offset = 0x4, fixed_abs, tag = 'smem constant byte address 0x4 - core index']
  #allocation1 [shape = 'u32[144,128]{1,0:T(1,128)}', space=vmem, size = 0x12000, scoped, tag = 'internal scratch']
  #allocation2 [shape = 'f32[16,32]{1,0:T(8,128)}', space=vmem, size = 0x2000, scoped, tag = 'scratch operand']
  %s0 = inlined_call_operand.hbm [shape: f32[16,32], index: 0, kind: input, shape index: {}]
  %s1 = inlined_call_operand.hbm [shape: f32[16,32], index: 1, kind: input, shape index: {}]
  %s2 = inlined_call_operand.hbm [shape: f32[32,32], index: 2, kind: input, shape index: {}]
  %s3 = inlined_call_operand.hbm [shape: f32[32,32], index: 3, kind: input, shape index: {}]
  %s4 = inlined_call_operand.hbm [shape: f32[16,32], index: 4, kind: output, shape index: {}]
  %s5 = sld [smem:[#allocation0]]
  $region50: #{fuse_layer.1} parent=0
    _
  %s7 = ssub.s32 1, %s5
  %s8 = scalar_select 0, %s7, %s5
  $region1: #{fuse_layer.1} parent=0
    #allocation3 [shape = 'u8[8192]{0}', space=vmem, size = 0x2000, scoped, tag = 'input window, operand 0, single buffered']
    #allocation4 [shape = 's32[1]{0}', space=sflag, size = 0x4, scoped, tag = 'scoped memory for fuse_layer.1']
    #allocation5 [shape = 's32[1]{0}', space=sflag, size = 0x4, scoped, tag = 'scoped memory for fuse_layer.1']
    #allocation6 [shape = 'u8[8192]{0}', space=vmem, size = 0x2000, scoped, tag = 'input window, operand 1, single buffered']
    #allocation7 [shape = 's32[1]{0}', space=sflag, size = 0x4, scoped, tag = 'scoped memory for fuse_layer.1']
    #allocation8 [shape = 'u8[16384]{0}', space=vmem, size = 0x4000, scoped, tag = 'input window, operand 2, single buffered']
    #allocation9 [shape = 'u8[16384]{0}', space=vmem, size = 0x4000, scoped, tag = 'input window, operand 3, single buffered']
    #allocation10 [shape = 's32[1]{0}', space=sflag, size = 0x4, scoped, tag = 'scoped memory for fuse_layer.1']
    #allocation11 [shape = 'u8[8192]{0}', space=vmem, size = 0x2000, scoped, tag = 'output window, operand 0, single buffered']
    %9 = vsyncpa [#allocation4], 0
    %10 = vsyncpa [#allocation7], 0
    %11 = vsyncpa [#allocation10], 0
    %12 = vsyncpa [#allocation5], 0
    // Predicated region
    $region2: #{fuse_layer.1} parent=1 // pred_check
      _
    $region3: #{fuse_layer.1} parent=1 // pred_check_branch
      %14 = sbr.rel (0) target = $region5
    $region4: #{fuse_layer.1} parent=1 // pred_region
      %s16 = ssub.s32 256, 256
      %17 = vsyncadd [#allocation4], %s16
      %s18 = sshll.u32 [#allocation3], 4
      %s19 = int_to_ptr.vmem [resolvable:$true] %s18
      %24 = dma.hbm_to_vmem [thread:$0]  %s0, 256, %s19, [#allocation4], 128, 128, 8
    $region5: #{fuse_layer.1} parent=1 // pred_fallthru
      _
    // Predicated region
    $region6: #{fuse_layer.1} parent=1 // pred_check
      _
    $region7: #{fuse_layer.1} parent=1 // pred_check_branch
      %26 = sbr.rel (0) target = $region9
    $region8: #{fuse_layer.1} parent=1 // pred_region
      %s28 = ssub.s32 256, 256
      %29 = vsyncadd [#allocation7], %s28
      %s30 = sshll.u32 [#allocation6], 4
      %s31 = int_to_ptr.vmem [resolvable:$true] %s30
      %36 = dma.hbm_to_vmem [thread:$0]  %s1, 256, %s31, [#allocation7], 128, 128, 8
    $region9: #{fuse_layer.1} parent=1 // pred_fallthru
      _
    // Predicated region
    $region10: #{fuse_layer.1} parent=1 // pred_check
      _
    $region11: #{fuse_layer.1} parent=1 // pred_check_branch
      %38 = sbr.rel (0) target = $region13
    $region12: #{fuse_layer.1} parent=1 // pred_region
      %s40 = ssub.s32 512, 512
      %41 = vsyncadd [#allocation7], %s40
      %s42 = sshll.u32 [#allocation8], 4
      %s43 = int_to_ptr.vmem [resolvable:$true] %s42
      %48 = dma.hbm_to_vmem [thread:$0]  %s2, 512, %s43, [#allocation7], 128, 128, 8
    $region13: #{fuse_layer.1} parent=1 // pred_fallthru
      _
    // Predicated region
    $region14: #{fuse_layer.1} parent=1 // pred_check
      _
    $region15: #{fuse_layer.1} parent=1 // pred_check_branch
      %50 = sbr.rel (0) target = $region17
    $region16: #{fuse_layer.1} parent=1 // pred_region
      %s52 = ssub.s32 512, 512
      %53 = vsyncadd [#allocation10], %s52
      %s54 = sshll.u32 [#allocation9], 4
      %s55 = int_to_ptr.vmem [resolvable:$true] %s54
      %60 = dma.hbm_to_vmem [thread:$0]  %s3, 512, %s55, [#allocation10], 128, 128, 8
    $region17: #{fuse_layer.1} parent=1 // pred_fallthru
      _
    // Predicated region
    $region18: #{fuse_layer.1} parent=1 // pred_check
      _
    $region19: #{fuse_layer.1} parent=1 // pred_check_branch
      %62 = sbr.rel (0) target = $region21
    $region20: #{fuse_layer.1} parent=1 // pred_region
      %63 = dma.done [#allocation4], 256
    $region21: #{fuse_layer.1} parent=1 // pred_fallthru
      _
    // Predicated region
    $region22: #{fuse_layer.1} parent=1 // pred_check
      _
    $region23: #{fuse_layer.1} parent=1 // pred_check_branch
      %65 = sbr.rel (0) target = $region25
    $region24: #{fuse_layer.1} parent=1 // pred_region
      %66 = dma.done [#allocation7], 256
    $region25: #{fuse_layer.1} parent=1 // pred_fallthru
      _
    // Predicated region
    $region26: #{fuse_layer.1} parent=1 // pred_check
      _
    $region27: #{fuse_layer.1} parent=1 // pred_check_branch
      %68 = sbr.rel (0) target = $region29
    $region28: #{fuse_layer.1} parent=1 // pred_region
      %69 = dma.done [#allocation7], 512
    $region29: #{fuse_layer.1} parent=1 // pred_fallthru
      _
    // Predicated region
    $region30: #{fuse_layer.1} parent=1 // pred_check
      _
    $region31: #{fuse_layer.1} parent=1 // pred_check_branch
      %71 = sbr.rel (0) target = $region33
    $region32: #{fuse_layer.1} parent=1 // pred_region
      %72 = dma.done [#allocation10], 512
    $region33: #{fuse_layer.1} parent=1 // pred_fallthru
      _
    %p73 = scmp.eq.s32.totalorder 0, 0
    // Predicated region
    $region34: #{fuse_layer.1} parent=1 // pred_check
      %p74 = pneg %p73
    $region35: #{fuse_layer.1} parent=1 // pred_check_branch
      %76 = sbr.rel (%p74) target = $region37
    $region36: #{fuse_layer.1} parent=1 // pred_region
      %vm77 = vcmask 261120
      %78 = vst.msk [vmem:[#allocation2] sm:$0xff] %vm77, 0.0
      %79 = vst.msk [vmem:[#allocation2 + $0x8] sm:$0xff] %vm77, 0.0
    $region37: #{fuse_layer.1} parent=1 // pred_fallthru
      _
    %v80 = vld [vmem:[#allocation2] sm:$0xff]
    %v81 = vld [vmem:[#allocation2 + $0x8] sm:$0xff]
    %v82 = vld [vmem:[#allocation3] sm:$0xff]
    %v83 = vld [vmem:[#allocation3 + $0x8] sm:$0xff]
    %v84 = vld [vmem:[#allocation8] sm:$0xff]
    %v85 = vld [vmem:[#allocation8 + $0x8] sm:$0xff]
    %v86 = vld [vmem:[#allocation8 + $0x10] sm:$0xff]
    %v87 = vld [vmem:[#allocation8 + $0x18] sm:$0xff]
    %vm88 = vcmask 261120
    %v90 = vsel %vm88, %v82, 0
    %v93 = vsel %vm88, %v83, 0
    %95 = vmatprep.subr.mxu0 0.0
    %96 = vmatpush1.msra.mxu0 0.0
    %97 = vmatprep.subr.mxu0 0.0
    %98 = vmatpush1.msra.mxu0 0.0
    %99 = vmatprep.subr.mxu0 0.0
    %100 = vmatpush1.msra.mxu0 0.0
    %101 = vmatprep.subr.mxu0 0.0
    %102 = vmatpush1.msra.mxu0 0.0
    %103 = vmatprep.subr.mxu0 0.0
    %104 = vmatpush1.msra.mxu0 0.0
    %105 = vmatprep.subr.mxu0 0.0
    %106 = vmatpush1.msra.mxu0 0.0
    %107 = vmatprep.subr.mxu0 0.0
    %108 = vmatpush1.msra.mxu0 0.0
    %109 = vmatprep.subr.mxu0 0.0
    %110 = vmatpush1.msra.mxu0 0.0
    %111 = vmatprep.subr.mxu0 0.0
    %112 = vmatpush1.msra.mxu0 0.0
    %113 = vmatprep.subr.mxu0 0.0
    %114 = vmatpush1.msra.mxu0 0.0
    %115 = vmatprep.subr.mxu0 0.0
    %116 = vmatpush1.msra.mxu0 0.0
    %117 = vmatprep.subr.mxu0 0.0
    %118 = vmatpush1.msra.mxu0 0.0
    %119 = vmatprep.subr.mxu0 0.0
    %120 = vmatpush1.msra.mxu0 %v87
    %121 = vmatprep.subr.mxu0 0.0
    %122 = vmatpush1.msra.mxu0 %v86
    %123 = vmatprep.subr.mxu0 0.0
    %124 = vmatpush1.msra.mxu0 %v85
    %125 = vmatprep.subr.mxu0 0.0
    %126 = vmatpush1.msra.mxu0 %v84
    %127 = vmatprep.subr.mxu0 0.0
    %128 = vmatpush2.msra.mxu0 0.0
    %129 = vmatprep.subr.mxu0 0.0
    %130 = vmatpush2.msra.mxu0 0.0
    %131 = vmatprep.subr.mxu0 0.0
    %132 = vmatpush2.msra.mxu0 0.0
    %133 = vmatprep.subr.mxu0 0.0
    %134 = vmatpush2.msra.mxu0 0.0
    %135 = vmatprep.subr.mxu0 0.0
    %136 = vmatpush2.msra.mxu0 0.0
    %137 = vmatprep.subr.mxu0 0.0
    %138 = vmatpush2.msra.mxu0 0.0
    %139 = vmatprep.subr.mxu0 0.0
    %140 = vmatpush2.msra.mxu0 0.0
    %141 = vmatprep.subr.mxu0 0.0
    %142 = vmatpush2.msra.mxu0 0.0
    %143 = vmatprep.subr.mxu0 0.0
    %144 = vmatpush2.msra.mxu0 0.0
    %145 = vmatprep.subr.mxu0 0.0
    %146 = vmatpush2.msra.mxu0 0.0
    %147 = vmatprep.subr.mxu0 0.0
    %148 = vmatpush2.msra.mxu0 0.0
    %149 = vmatprep.subr.mxu0 0.0
    %150 = vmatpush2.msra.mxu0 0.0
    %151 = vmatprep.subr.mxu0 0.0
    %152 = vmatpush2.msra.mxu0 0.0
    %153 = vmatprep.subr.mxu0 0.0
    %154 = vmatpush2.msra.mxu0 0.0
    %155 = vmatprep.subr.mxu0 0.0
    %156 = vmatpush2.msra.mxu0 0.0
    %157 = vmatprep.subr.mxu0 0.0
    %158 = vmatpush2.msra.mxu0 0.0
    %159 = vmatprep.mubr.f32.mxu0 0.0
    %160 = vmatmul.mubr.f32.gmra.mxu0 %v90
    %v161 = vpop.f32.mrf.mxu0
    %v162 = vadd.f32 0.0, %v161
    %v163 = vpop.f32.mrf.mxu0
    %164 = vmatprep.mubr.f32.mxu0 0.0
    %165 = vmatmul.mubr.f32.gmra.mxu0 %v93
    %v166 = vpop.f32.mrf.mxu0
    %v167 = vadd.f32 0.0, %v166
    %v168 = vpop.f32.mrf.mxu0
    %169 = vdwg.mxu0
    %v170 = vadd.f32 %v80, %v162
    %v171 = vadd.f32 %v81, %v167
    %172 = vst.msk [vmem:[#allocation2] sm:$0xff] %vm88, %v170
    %173 = vst.msk [vmem:[#allocation2 + $0x8] sm:$0xff] %vm88, %v171
    %v174 = vld [vmem:[#allocation2] sm:$0xff]
    %v175 = vld [vmem:[#allocation2 + $0x8] sm:$0xff]
    %v176 = vld [vmem:[#allocation6] sm:$0xff]
    %v177 = vld [vmem:[#allocation6 + $0x8] sm:$0xff]
    %v178 = vld [vmem:[#allocation9] sm:$0xff]
    %v179 = vld [vmem:[#allocation9 + $0x8] sm:$0xff]
    %v180 = vld [vmem:[#allocation9 + $0x10] sm:$0xff]
    %v181 = vld [vmem:[#allocation9 + $0x18] sm:$0xff]
    %v183 = vsel %vm88, %v176, 0
    %v186 = vsel %vm88, %v177, 0
    %188 = vmatprep.subr.mxu0 0.0
    %189 = vmatpush1.msra.mxu0 0.0
    %190 = vmatprep.subr.mxu0 0.0
    %191 = vmatpush1.msra.mxu0 0.0
    %192 = vmatprep.subr.mxu0 0.0
    %193 = vmatpush1.msra.mxu0 0.0
    %194 = vmatprep.subr.mxu0 0.0
    %195 = vmatpush1.msra.mxu0 0.0
    %196 = vmatprep.subr.mxu0 0.0
    %197 = vmatpush1.msra.mxu0 0.0
    %198 = vmatprep.subr.mxu0 0.0
    %199 = vmatpush1.msra.mxu0 0.0
    %200 = vmatprep.subr.mxu0 0.0
    %201 = vmatpush1.msra.mxu0 0.0
    %202 = vmatprep.subr.mxu0 0.0
    %203 = vmatpush1.msra.mxu0 0.0
    %204 = vmatprep.subr.mxu0 0.0
    %205 = vmatpush1.msra.mxu0 0.0
    %206 = vmatprep.subr.mxu0 0.0
    %207 = vmatpush1.msra.mxu0 0.0
    %208 = vmatprep.subr.mxu0 0.0
    %209 = vmatpush1.msra.mxu0 0.0
    %210 = vmatprep.subr.mxu0 0.0
    %211 = vmatpush1.msra.mxu0 0.0
    %212 = vmatprep.subr.mxu0 0.0
    %213 = vmatpush1.msra.mxu0 %v181
    %214 = vmatprep.subr.mxu0 0.0
    %215 = vmatpush1.msra.mxu0 %v180
    %216 = vmatprep.subr.mxu0 0.0
    %217 = vmatpush1.msra.mxu0 %v179
    %218 = vmatprep.subr.mxu0 0.0
    %219 = vmatpush1.msra.mxu0 %v178
    %220 = vmatprep.subr.mxu0 0.0
    %221 = vmatpush2.msra.mxu0 0.0
    %222 = vmatprep.subr.mxu0 0.0
    %223 = vmatpush2.msra.mxu0 0.0
    %224 = vmatprep.subr.mxu0 0.0
    %225 = vmatpush2.msra.mxu0 0.0
    %226 = vmatprep.subr.mxu0 0.0
    %227 = vmatpush2.msra.mxu0 0.0
    %228 = vmatprep.subr.mxu0 0.0
    %229 = vmatpush2.msra.mxu0 0.0
    %230 = vmatprep.subr.mxu0 0.0
    %231 = vmatpush2.msra.mxu0 0.0
    %232 = vmatprep.subr.mxu0 0.0
    %233 = vmatpush2.msra.mxu0 0.0
    %234 = vmatprep.subr.mxu0 0.0
    %235 = vmatpush2.msra.mxu0 0.0
    %236 = vmatprep.subr.mxu0 0.0
    %237 = vmatpush2.msra.mxu0 0.0
    %238 = vmatprep.subr.mxu0 0.0
    %239 = vmatpush2.msra.mxu0 0.0
    %240 = vmatprep.subr.mxu0 0.0
    %241 = vmatpush2.msra.mxu0 0.0
    %242 = vmatprep.subr.mxu0 0.0
    %243 = vmatpush2.msra.mxu0 0.0
    %244 = vmatprep.subr.mxu0 0.0
    %245 = vmatpush2.msra.mxu0 0.0
    %246 = vmatprep.subr.mxu0 0.0
    %247 = vmatpush2.msra.mxu0 0.0
    %248 = vmatprep.subr.mxu0 0.0
    %249 = vmatpush2.msra.mxu0 0.0
    %250 = vmatprep.subr.mxu0 0.0
    %251 = vmatpush2.msra.mxu0 0.0
    %252 = vmatprep.mubr.f32.mxu0 0.0
    %253 = vmatmul.mubr.f32.gmra.mxu0 %v183
    %v254 = vpop.f32.mrf.mxu0
    %v255 = vadd.f32 0.0, %v254
    %v256 = vpop.f32.mrf.mxu0
    %257 = vmatprep.mubr.f32.mxu0 0.0
    %258 = vmatmul.mubr.f32.gmra.mxu0 %v186
    %v259 = vpop.f32.mrf.mxu0
    %v260 = vadd.f32 0.0, %v259
    %v261 = vpop.f32.mrf.mxu0
    %262 = vdwg.mxu0
    %v263 = vadd.f32 %v174, %v255
    %v264 = vadd.f32 %v175, %v260
    %265 = vst.msk [vmem:[#allocation2] sm:$0xff] %vm88, %v263
    %266 = vst.msk [vmem:[#allocation2 + $0x8] sm:$0xff] %vm88, %v264
    // Predicated region
    $region38: #{fuse_layer.1} parent=1 // pred_check
      %p267 = pneg %p73
    $region39: #{fuse_layer.1} parent=1 // pred_check_branch
      %269 = sbr.rel (%p267) target = $region41
    $region40: #{fuse_layer.1} parent=1 // pred_region
      %v270 = vld [vmem:[#allocation2] sm:$0xff]
      %v271 = vld [vmem:[#allocation2 + $0x8] sm:$0xff]
      %272 = vst.msk [vmem:[#allocation11] sm:$0xff] %vm88, %v270
      %273 = vst.msk [vmem:[#allocation11 + $0x8] sm:$0xff] %vm88, %v271
    $region41: #{fuse_layer.1} parent=1 // pred_fallthru
      _
    // Predicated region
    $region42: #{fuse_layer.1} parent=1 // pred_check
      _
    $region43: #{fuse_layer.1} parent=1 // pred_check_branch
      %275 = sbr.rel (0) target = $region45
    $region44: #{fuse_layer.1} parent=1 // pred_region
      %s277 = ssub.s32 256, 256
      %278 = vsyncadd [#allocation5], %s277
      %s279 = sshll.u32 [#allocation11], 4
      %s280 = int_to_ptr.vmem [resolvable:$true] %s279
      %285 = dma.vmem_to_hbm [thread:$0]  %s280, 256, %s4, [#allocation5], 128, 128, 8
    $region45: #{fuse_layer.1} parent=1 // pred_fallthru
      _
    // Predicated region
    $region46: #{fuse_layer.1} parent=1 // pred_check
      _
    $region47: #{fuse_layer.1} parent=1 // pred_check_branch
      %287 = sbr.rel (0) target = $region49
    $region48: #{fuse_layer.1} parent=1 // pred_region
      %288 = dma.done [#allocation5], 256
    $region49: #{fuse_layer.1} parent=1 // pred_fallthru
      _
    %289 = vsyncpa [#allocation4], 1
    %290 = vsyncpa [#allocation7], 1
    %291 = vsyncpa [#allocation10], 1
    %292 = vsyncpa [#allocation5], 1

</llo_original>
